<compile_context>
chip_gen: v5e
topology: v5e:2x2
jax: 0.10.0
libtpu: 0.0.40
codegen_flags: <defaults>
</compile_context>

<pallas_src>
import jax
import jax.numpy as jnp
from jax.experimental import pallas as pl
from jax.experimental.pallas import tpu as pltpu

# Logical (PyTorch) sizes.
IN_FEATURES = 20
HIDDEN = 256
OUT_FEATURES = 10

# Tiling / layout constants.
BATCH_TILE = 8     # sublane-aligned rows processed per grid step
OUT_PAD = 128      # lane-dense output columns (unmasked vst); sliced in wrapper


def _mlp_kernel(x_ref, w1_ref, b1_ref, w2_ref, b2_ref, o_ref):
    # Linear(20,256) -> ReLU -> Linear(256, OUT_PAD): two MXU matmuls with f32
    # accumulation, bias add + ReLU on the VPU.  Everything is VMEM-resident;
    # zero-padded w2/b2 columns contribute exactly zero to the valid outputs.
    h = jnp.dot(x_ref[...], w1_ref[...], preferred_element_type=jnp.float32)
    h = jnp.maximum(h + b1_ref[...], 0.0)                       # F.relu
    y = jnp.dot(h, w2_ref[...], preferred_element_type=jnp.float32) + b2_ref[...]
    o_ref[...] = y.astype(o_ref.dtype)


def prepare_params(w1, b1, w2, b2):
    """One-time parameter prep (load time, not per call).

    Weights use (in, out) layout (already transposed vs. nn.Linear.weight),
    biases are (1, out).  w1/b1 keep their logical shapes (no K padding).
    w2/b2 are zero-padded on the output dim to OUT_PAD for a lane-dense store.
    """
    w1_p = w1.astype(jnp.float32)                                   # (20, 256)
    b1_p = b1.astype(jnp.float32)                                   # (1, 256)
    w2_p = jnp.zeros((HIDDEN, OUT_PAD), jnp.float32).at[:, :OUT_FEATURES].set(w2)
    b2_p = jnp.zeros((1, OUT_PAD), jnp.float32).at[:, :OUT_FEATURES].set(b2)
    return w1_p, b1_p, w2_p, b2_p


@jax.jit
def mlp_forward(x, w1_p, b1_p, w2_p, b2_p):
    """Linear(20,256) -> ReLU -> Linear(256,10) via one batch-tiled Pallas call.

    The grid iterates over BATCH_TILE-row tiles of x; the weights/biases have
    constant index_maps so they are loaded into VMEM once and reused across all
    grid steps.  The (batch, OUT_PAD) result is sliced back to (batch, 10).
    """
    batch = x.shape[0]
    grid_b = pl.cdiv(batch, BATCH_TILE)

    flops = 2 * batch * (IN_FEATURES * HIDDEN + HIDDEN * OUT_PAD)
    bytes_accessed = 4 * (
        batch * IN_FEATURES                    # x
        + IN_FEATURES * HIDDEN + HIDDEN        # w1, b1 (DMA'd once)
        + HIDDEN * OUT_PAD + OUT_PAD           # w2, b2 (DMA'd once)
        + batch * OUT_PAD                      # out
    )

    out_p = pl.pallas_call(
        _mlp_kernel,
        out_shape=jax.ShapeDtypeStruct((batch, OUT_PAD), jnp.float32),
        grid=(grid_b,),
        in_specs=[
            pl.BlockSpec((BATCH_TILE, IN_FEATURES), lambda i: (i, 0)),  # x: per-step tile
            pl.BlockSpec((IN_FEATURES, HIDDEN), lambda i: (0, 0)),      # w1: VMEM-resident
            pl.BlockSpec((1, HIDDEN), lambda i: (0, 0)),                # b1: VMEM-resident
            pl.BlockSpec((HIDDEN, OUT_PAD), lambda i: (0, 0)),          # w2: VMEM-resident
            pl.BlockSpec((1, OUT_PAD), lambda i: (0, 0)),               # b2: VMEM-resident
        ],
        out_specs=pl.BlockSpec((BATCH_TILE, OUT_PAD), lambda i: (i, 0)),
        compiler_params=pltpu.CompilerParams(
            # Batch tiles are independent: shard across both TCs on v7x.
            dimension_semantics=("parallel",),
        ),
        cost_estimate=pl.CostEstimate(
            flops=flops, transcendentals=0, bytes_accessed=bytes_accessed
        ),
    )(x, w1_p, b1_p, w2_p, b2_p)

    # Padded rows/columns of out_p contain garbage; always slice before use.
    return out_p[:batch, :OUT_FEATURES]


def init_params(key):
    """Deterministic synthetic parameters matching nn.Linear default init,
    stored as (in, out) weights and (1, out) biases."""
    k1, k2, k3, k4 = jax.random.split(key, 4)
    bound1 = 1.0 / jnp.sqrt(IN_FEATURES)
    bound2 = 1.0 / jnp.sqrt(HIDDEN)
    w1 = jax.random.uniform(k1, (IN_FEATURES, HIDDEN), jnp.float32, -bound1, bound1)
    b1 = jax.random.uniform(k2, (1, HIDDEN), jnp.float32, -bound1, bound1)
    w2 = jax.random.uniform(k3, (HIDDEN, OUT_FEATURES), jnp.float32, -bound2, bound2)
    b2 = jax.random.uniform(k4, (1, OUT_FEATURES), jnp.float32, -bound2, bound2)
    return w1, b1, w2, b2


if __name__ == "__main__":
    key = jax.random.PRNGKey(0)
    kx, kp = jax.random.split(key)

    # x = torch.rand((2, 20)) -> uniform [0, 1)
    x = jax.random.uniform(kx, (2, IN_FEATURES), jnp.float32)
    w1, b1, w2, b2 = init_params(kp)

    # Pad / cast parameters once, up front (not per call).
    w1_p, b1_p, w2_p, b2_p = prepare_params(w1, b1, w2, b2)

    out = mlp_forward(x, w1_p, b1_p, w2_p, b2_p)
    out = jax.block_until_ready(out)

    # Reference check in plain JAX (same math, unpadded).
    ref = jnp.maximum(x @ w1 + b1, 0.0) @ w2 + b2
    assert out.shape == (2, OUT_FEATURES)
    assert jnp.allclose(out, ref, atol=1e-5, rtol=1e-5)

    print("KERNEL_OK")
</pallas_src>

<mosaic_0001>
module attributes {stable_mosaic.version = 11 : i64} {
  func.func @_mlp_kernel(%arg0: i32, %arg1: memref<8x20xf32, #tpu.memory_space<vmem>>, %arg2: memref<20x256xf32, #tpu.memory_space<vmem>>, %arg3: memref<1x256xf32, #tpu.memory_space<vmem>>, %arg4: memref<256x128xf32, #tpu.memory_space<vmem>>, %arg5: memref<1x128xf32, #tpu.memory_space<vmem>>, %arg6: memref<8x128xf32, #tpu.memory_space<vmem>>) attributes {dimension_semantics = [#tpu.dimension_semantics<parallel>], iteration_bounds = array<i64: 1>, scalar_prefetch = 0 : i64, scratch_operands = 0 : i64, tpu.core_type = #tpu.core_type<tc>, window_params = [{transform_indices = @transform_0, window_bounds = array<i64: 8, 20>}, {pipeline_mode = #tpu.pipeline_mode<synchronous>, transform_indices = @transform_1, window_bounds = array<i64: 20, 256>}, {pipeline_mode = #tpu.pipeline_mode<synchronous>, transform_indices = @transform_2, window_bounds = array<i64: 1, 256>}, {pipeline_mode = #tpu.pipeline_mode<synchronous>, transform_indices = @transform_3, window_bounds = array<i64: 256, 128>}, {pipeline_mode = #tpu.pipeline_mode<synchronous>, transform_indices = @transform_4, window_bounds = array<i64: 1, 128>}, {transform_indices = @transform_5, window_bounds = array<i64: 8, 128>}]} {
    %c0 = arith.constant 0 : index
    %c0_0 = arith.constant 0 : index
    %0 = vector.load %arg1[%c0, %c0_0] : memref<8x20xf32, #tpu.memory_space<vmem>>, vector<8x20xf32>
    %c0_1 = arith.constant 0 : index
    %c0_2 = arith.constant 0 : index
    %1 = vector.load %arg2[%c0_1, %c0_2] : memref<20x256xf32, #tpu.memory_space<vmem>>, vector<20x256xf32>
    %cst = arith.constant dense<0.000000e+00> : vector<8x256xf32>
    %2 = tpu.matmul %0, %1, %cst {dimension_numbers = #tpu.dot_dimension_numbers<[1], [0], [0], [1], [0, 0, 1, 1], [], []>} : vector<8x20xf32>, vector<20x256xf32>, vector<8x256xf32> -> vector<8x256xf32>
    %c0_3 = arith.constant 0 : index
    %c0_4 = arith.constant 0 : index
    %3 = vector.load %arg3[%c0_3, %c0_4] : memref<1x256xf32, #tpu.memory_space<vmem>>, vector<1x256xf32>
    %4 = vector.broadcast %3 : vector<1x256xf32> to vector<8x256xf32>
    %5 = arith.addf %2, %4 : vector<8x256xf32>
    %cst_5 = arith.constant 0.000000e+00 : f32
    %6 = vector.broadcast %cst_5 : f32 to vector<8x256xf32>
    %7 = arith.maximumf %5, %6 : vector<8x256xf32>
    %c0_6 = arith.constant 0 : index
    %c0_7 = arith.constant 0 : index
    %8 = vector.load %arg4[%c0_6, %c0_7] : memref<256x128xf32, #tpu.memory_space<vmem>>, vector<256x128xf32>
    %cst_8 = arith.constant dense<0.000000e+00> : vector<8x128xf32>
    %9 = tpu.matmul %7, %8, %cst_8 {dimension_numbers = #tpu.dot_dimension_numbers<[1], [0], [0], [1], [0, 0, 1, 1], [], []>} : vector<8x256xf32>, vector<256x128xf32>, vector<8x128xf32> -> vector<8x128xf32>
    %c0_9 = arith.constant 0 : index
    %c0_10 = arith.constant 0 : index
    %10 = vector.load %arg5[%c0_9, %c0_10] : memref<1x128xf32, #tpu.memory_space<vmem>>, vector<1x128xf32>
    %11 = vector.broadcast %10 : vector<1x128xf32> to vector<8x128xf32>
    %12 = arith.addf %9, %11 : vector<8x128xf32>
    %c0_11 = arith.constant 0 : index
    %c0_12 = arith.constant 0 : index
    %13 = vector.load %arg6[%c0_11, %c0_12] : memref<8x128xf32, #tpu.memory_space<vmem>>, vector<8x128xf32>
    tpu.vector_store %arg6[%c0_11, %c0_12], %12 {strides = array<i32>} : memref<8x128xf32, #tpu.memory_space<vmem>>, vector<8x128xf32>,
    return
  }
  func.func @transform_0(%arg0: i32) -> (i32, i32) {
    %c0_i32 = arith.constant 0 : i32
    %c0_i32_0 = arith.constant 0 : i32
    return %arg0, %c0_i32 : i32, i32
  }
  func.func @transform_1(%arg0: i32) -> (i32, i32) {
    %c0_i32 = arith.constant 0 : i32
    %c0_i32_0 = arith.constant 0 : i32
    %c0_i32_1 = arith.constant 0 : i32
    return %c0_i32, %c0_i32_0 : i32, i32
  }
  func.func @transform_2(%arg0: i32) -> (i32, i32) {
    %c0_i32 = arith.constant 0 : i32
    %c0_i32_0 = arith.constant 0 : i32
    %c0_i32_1 = arith.constant 0 : i32
    return %c0_i32, %c0_i32_0 : i32, i32
  }
  func.func @transform_3(%arg0: i32) -> (i32, i32) {
    %c0_i32 = arith.constant 0 : i32
    %c0_i32_0 = arith.constant 0 : i32
    %c0_i32_1 = arith.constant 0 : i32
    return %c0_i32, %c0_i32_0 : i32, i32
  }
  func.func @transform_4(%arg0: i32) -> (i32, i32) {
    %c0_i32 = arith.constant 0 : i32
    %c0_i32_0 = arith.constant 0 : i32
    %c0_i32_1 = arith.constant 0 : i32
    return %c0_i32, %c0_i32_0 : i32, i32
  }
  func.func @transform_5(%arg0: i32) -> (i32, i32) {
    %c0_i32 = arith.constant 0 : i32
    %c0_i32_0 = arith.constant 0 : i32
    return %arg0, %c0_i32 : i32, i32
  }
}

</mosaic_0001>

<llo_original>
// kernel: mlp_forward.1
$region0: #{mlp_forward.1}
  #allocation0 [shape = 'u32[]', space=smem, size = 0x4, offset = 0x4, fixed_abs, tag = 'smem constant byte address 0x4 - core index']
  #allocation1 [shape = 'u32[72,128]{1,0:T(1,128)}', space=vmem, size = 0x9000, scoped, tag = 'internal scratch']
  %s0 = inlined_call_operand.hbm [shape: f32[2,20], index: 0, kind: input, shape index: {}]
  %s1 = inlined_call_operand.hbm [shape: f32[20,256], index: 1, kind: input, shape index: {}]
  %s2 = inlined_call_operand.hbm [shape: f32[1,256], index: 2, kind: input, shape index: {}]
  %s3 = inlined_call_operand.hbm [shape: f32[256,128], index: 3, kind: input, shape index: {}]
  %s4 = inlined_call_operand.vmem [shape: f32[1,128], index: 4, kind: input, shape index: {}]
  %s5 = inlined_call_operand.hbm [shape: f32[2,128], index: 5, kind: output, shape index: {}]
  %s6 = sld [smem:[#allocation0]]
  $region46: #{mlp_forward.1} parent=0
    _
  %s8 = ssub.s32 1, %s6
  %s9 = scalar_select 0, %s8, %s6
  $region1: #{mlp_forward.1} parent=0
    #allocation2 [shape = 'u8[4096]{0}', space=vmem, size = 0x1000, scoped, tag = 'input window, operand 0, single buffered']
    #allocation3 [shape = 's32[1]{0}', space=sflag, size = 0x4, scoped, tag = 'scoped memory for mlp_forward.1']
    #allocation4 [shape = 's32[1]{0}', space=sflag, size = 0x4, scoped, tag = 'scoped memory for mlp_forward.1']
    #allocation5 [shape = 'u8[24576]{0}', space=vmem, size = 0x6000, scoped, tag = 'input window, operand 1, single buffered']
    #allocation6 [shape = 's32[1]{0}', space=sflag, size = 0x4, scoped, tag = 'scoped memory for mlp_forward.1']
    #allocation7 [shape = 'u8[1024]{0}', space=vmem, size = 0x400, scoped, tag = 'input window, operand 2, single buffered']
    #allocation8 [shape = 'u8[131072]{0}', space=vmem, size = 0x20000, scoped, tag = 'input window, operand 3, single buffered']
    #allocation9 [shape = 's32[1]{0}', space=sflag, size = 0x4, scoped, tag = 'scoped memory for mlp_forward.1']
    #allocation10 [shape = 'u8[4096]{0}', space=vmem, size = 0x1000, scoped, tag = 'output window, operand 0, single buffered']
    %10 = vsyncpa [#allocation3], 0
    %11 = vsyncpa [#allocation6], 0
    %12 = vsyncpa [#allocation9], 0
    %13 = vsyncpa [#allocation4], 0
    // Predicated region
    $region2: #{mlp_forward.1} parent=1 // pred_check
      _
    $region3: #{mlp_forward.1} parent=1 // pred_check_branch
      %15 = sbr.rel (0) target = $region5
    $region4: #{mlp_forward.1} parent=1 // pred_region
      %17 = vsyncadd [#allocation3], 96
      %s18 = sshll.u32 %s0, 4
      %s19 = int_to_ptr.hbm [resolvable:$true] %s18
      %s20 = sshll.u32 [#allocation2], 4
      %s21 = int_to_ptr.vmem [resolvable:$true] %s20
      %26 = dma.hbm_to_vmem [thread:$0]  %s19, 32, %s21, [#allocation3], 32, 32, 2
    $region5: #{mlp_forward.1} parent=1 // pred_fallthru
      _
    // Predicated region
    $region6: #{mlp_forward.1} parent=1 // pred_check
      _
    $region7: #{mlp_forward.1} parent=1 // pred_check_branch
      %28 = sbr.rel (0) target = $region9
    $region8: #{mlp_forward.1} parent=1 // pred_region
      %30 = vsyncadd [#allocation6], 0
      %s31 = sshll.u32 %s1, 4
      %s32 = int_to_ptr.hbm [resolvable:$true] %s31
      %s33 = sshll.u32 [#allocation5], 4
      %s34 = int_to_ptr.vmem [resolvable:$true] %s33
      %39 = dma.hbm_to_vmem [thread:$0]  %s32, 768, %s34, [#allocation6], 256, 256, 16
    $region9: #{mlp_forward.1} parent=1 // pred_fallthru
      _
    // Predicated region
    $region10: #{mlp_forward.1} parent=1 // pred_check
      _
    $region11: #{mlp_forward.1} parent=1 // pred_check_branch
      %41 = sbr.rel (0) target = $region13
    $region12: #{mlp_forward.1} parent=1 // pred_region
      %43 = vsyncadd [#allocation6], 0
      %s45 = sshll.u32 %s2, 4
      %s46 = int_to_ptr.hbm [resolvable:$true] %s45
      %s47 = sshll.u32 [#allocation7], 4
      %s48 = int_to_ptr.vmem [resolvable:$true] %s47
      %50 = dma.hbm_to_vmem [thread:$0]  %s46, 32, %s48, [#allocation6]
    $region13: #{mlp_forward.1} parent=1 // pred_fallthru
      _
    // Predicated region
    $region14: #{mlp_forward.1} parent=1 // pred_check
      _
    $region15: #{mlp_forward.1} parent=1 // pred_check_branch
      %52 = sbr.rel (0) target = $region17
    $region16: #{mlp_forward.1} parent=1 // pred_region
      %54 = vsyncadd [#allocation9], 0
      %s55 = sshll.u32 %s3, 4
      %s56 = int_to_ptr.hbm [resolvable:$true] %s55
      %s57 = sshll.u32 [#allocation8], 4
      %s58 = int_to_ptr.vmem [resolvable:$true] %s57
      %63 = dma.hbm_to_vmem [thread:$0]  %s56, 4096, %s58, [#allocation9], 128, 128, 8
    $region17: #{mlp_forward.1} parent=1 // pred_fallthru
      _
    // Predicated region
    $region18: #{mlp_forward.1} parent=1 // pred_check
      _
    $region19: #{mlp_forward.1} parent=1 // pred_check_branch
      %65 = sbr.rel (0) target = $region21
    $region20: #{mlp_forward.1} parent=1 // pred_region
      _
    $region21: #{mlp_forward.1} parent=1 // pred_fallthru
      _
    // Predicated region
    $region22: #{mlp_forward.1} parent=1 // pred_check
      _
    $region23: #{mlp_forward.1} parent=1 // pred_check_branch
      %67 = sbr.rel (0) target = $region25
    $region24: #{mlp_forward.1} parent=1 // pred_region
      %69 = dma.done [#allocation3], 128
    $region25: #{mlp_forward.1} parent=1 // pred_fallthru
      _
    // Predicated region
    $region26: #{mlp_forward.1} parent=1 // pred_check
      _
    $region27: #{mlp_forward.1} parent=1 // pred_check_branch
      %71 = sbr.rel (0) target = $region29
    $region28: #{mlp_forward.1} parent=1 // pred_region
      %73 = dma.done [#allocation6], 768
    $region29: #{mlp_forward.1} parent=1 // pred_fallthru
      _
    // Predicated region
    $region30: #{mlp_forward.1} parent=1 // pred_check
      _
    $region31: #{mlp_forward.1} parent=1 // pred_check_branch
      %75 = sbr.rel (0) target = $region33
    $region32: #{mlp_forward.1} parent=1 // pred_region
      %77 = dma.done [#allocation6], 32
    $region33: #{mlp_forward.1} parent=1 // pred_fallthru
      _
    // Predicated region
    $region34: #{mlp_forward.1} parent=1 // pred_check
      _
    $region35: #{mlp_forward.1} parent=1 // pred_check_branch
      %79 = sbr.rel (0) target = $region37
    $region36: #{mlp_forward.1} parent=1 // pred_region
      %81 = dma.done [#allocation9], 4096
    $region37: #{mlp_forward.1} parent=1 // pred_fallthru
      _
    %v82 = vld [vmem:[#allocation2] sm:$0xff]
    %v83 = vld [vmem:[#allocation5] sm:$0xff]
    %v84 = vld [vmem:[#allocation5 + $0x8] sm:$0xff]
    %v85 = vld [vmem:[#allocation5 + $0x10] sm:$0xff]
    %v86 = vld [vmem:[#allocation5 + $0x18] sm:$0xff]
    %v87 = vld [vmem:[#allocation5 + $0x20] sm:$0xf]
    %v88 = vld [vmem:[#allocation5 + $0x28] sm:$0xf]
    %v89 = vld [vmem:[#allocation7] sm:$0x3]
    %v91 = vperm.slane %v89, 0
    %v92 = vperm.slane %v89, 1
    %vm95 = vcmask 162816
    %v97 = vsel %vm95, %v82, 0
    %vm99 = vcmask 1043456
    %v101 = vsel %vm99, %v87, 0
    %v104 = vsel %vm99, %v88, 0
    %106 = vmatpush.msra.mxu0 0.0
    %107 = vmatpush.msra.mxu0 0.0
    %108 = vmatpush.msra.mxu0 0.0
    %109 = vmatpush.msra.mxu0 0.0
    %110 = vmatpush.msra.mxu0 0.0
    %111 = vmatpush.msra.mxu0 0.0
    %112 = vmatpush.msra.mxu0 0.0
    %113 = vmatpush.msra.mxu0 0.0
    %114 = vmatpush.msra.mxu0 0.0
    %115 = vmatpush.msra.mxu0 0.0
    %116 = vmatpush.msra.mxu0 0.0
    %117 = vmatpush.msra.mxu0 0.0
    %118 = vmatpush.msra.mxu0 0.0
    %119 = vmatpush.msra.mxu0 %v101
    %120 = vmatpush.msra.mxu0 %v85
    %121 = vmatpush.msra.mxu0 %v83
    %122 = vmatmul.f32.gmra.mxu0 %v97
    %v123 = vpop.f32.mrf.mxu0
    %v124 = vadd.f32 %v91, %v123
    %125 = vdwg.mxu0
    %126 = vmatpush.msra.mxu0 0.0
    %127 = vmatpush.msra.mxu0 0.0
    %128 = vmatpush.msra.mxu0 0.0
    %129 = vmatpush.msra.mxu0 0.0
    %130 = vmatpush.msra.mxu0 0.0
    %131 = vmatpush.msra.mxu0 0.0
    %132 = vmatpush.msra.mxu0 0.0
    %133 = vmatpush.msra.mxu0 0.0
    %134 = vmatpush.msra.mxu0 0.0
    %135 = vmatpush.msra.mxu0 0.0
    %136 = vmatpush.msra.mxu0 0.0
    %137 = vmatpush.msra.mxu0 0.0
    %138 = vmatpush.msra.mxu0 0.0
    %139 = vmatpush.msra.mxu0 %v104
    %140 = vmatpush.msra.mxu0 %v86
    %141 = vmatpush.msra.mxu0 %v84
    %142 = vmatmul.f32.gmra.mxu0 %v97
    %v143 = vpop.f32.mrf.mxu0
    %v144 = vadd.f32 %v92, %v143
    %145 = vdwg.mxu0
    %v146 = vmax.f32 %v124, 0.0
    %v147 = vmax.f32 %v144, 0.0
    %v148 = vld [vmem:[#allocation8] sm:$0xff]
    %v149 = vld [vmem:[#allocation8 + $0x8] sm:$0xff]
    %v150 = vld [vmem:[#allocation8 + $0x10] sm:$0xff]
    %v151 = vld [vmem:[#allocation8 + $0x18] sm:$0xff]
    %v152 = vld [vmem:[#allocation8 + $0x20] sm:$0xff]
    %v153 = vld [vmem:[#allocation8 + $0x28] sm:$0xff]
    %v154 = vld [vmem:[#allocation8 + $0x30] sm:$0xff]
    %v155 = vld [vmem:[#allocation8 + $0x38] sm:$0xff]
    %v156 = vld [vmem:[#allocation8 + $0x40] sm:$0xff]
    %v157 = vld [vmem:[#allocation8 + $0x48] sm:$0xff]
    %v158 = vld [vmem:[#allocation8 + $0x50] sm:$0xff]
    %v159 = vld [vmem:[#allocation8 + $0x58] sm:$0xff]
    %v160 = vld [vmem:[#allocation8 + $0x60] sm:$0xff]
    %v161 = vld [vmem:[#allocation8 + $0x68] sm:$0xff]
    %v162 = vld [vmem:[#allocation8 + $0x70] sm:$0xff]
    %v163 = vld [vmem:[#allocation8 + $0x78] sm:$0xff]
    %v164 = vld [vmem:[#allocation8 + $0x80] sm:$0xff]
    %v165 = vld [vmem:[#allocation8 + $0x88] sm:$0xff]
    %v166 = vld [vmem:[#allocation8 + $0x90] sm:$0xff]
    %v167 = vld [vmem:[#allocation8 + $0x98] sm:$0xff]
    %v168 = vld [vmem:[#allocation8 + $0xa0] sm:$0xff]
    %v169 = vld [vmem:[#allocation8 + $0xa8] sm:$0xff]
    %v170 = vld [vmem:[#allocation8 + $0xb0] sm:$0xff]
    %v171 = vld [vmem:[#allocation8 + $0xb8] sm:$0xff]
    %v172 = vld [vmem:[#allocation8 + $0xc0] sm:$0xff]
    %v173 = vld [vmem:[#allocation8 + $0xc8] sm:$0xff]
    %v174 = vld [vmem:[#allocation8 + $0xd0] sm:$0xff]
    %v175 = vld [vmem:[#allocation8 + $0xd8] sm:$0xff]
    %v176 = vld [vmem:[#allocation8 + $0xe0] sm:$0xff]
    %v177 = vld [vmem:[#allocation8 + $0xe8] sm:$0xff]
    %v178 = vld [vmem:[#allocation8 + $0xf0] sm:$0xff]
    %v179 = vld [vmem:[#allocation8 + $0xf8] sm:$0xff]
    %v180 = vld [vmem:[%s4] sm:$0x1]
    %v182 = vperm.slane %v180, 0
    %184 = vmatpush.msra.mxu0 %v163
    %185 = vmatpush.msra.mxu0 %v162
    %186 = vmatpush.msra.mxu0 %v161
    %187 = vmatpush.msra.mxu0 %v160
    %188 = vmatpush.msra.mxu0 %v159
    %189 = vmatpush.msra.mxu0 %v158
    %190 = vmatpush.msra.mxu0 %v157
    %191 = vmatpush.msra.mxu0 %v156
    %192 = vmatpush.msra.mxu0 %v155
    %193 = vmatpush.msra.mxu0 %v154
    %194 = vmatpush.msra.mxu0 %v153
    %195 = vmatpush.msra.mxu0 %v152
    %196 = vmatpush.msra.mxu0 %v151
    %197 = vmatpush.msra.mxu0 %v150
    %198 = vmatpush.msra.mxu0 %v149
    %199 = vmatpush.msra.mxu0 %v148
    %200 = vmatmul.f32.gmra.mxu0 %v146
    %v201 = vpop.f32.mrf.mxu0
    %v202 = vadd.f32 %v182, %v201
    %203 = vdwg.mxu0
    %204 = vmatpush.msra.mxu0 %v179
    %205 = vmatpush.msra.mxu0 %v178
    %206 = vmatpush.msra.mxu0 %v177
    %207 = vmatpush.msra.mxu0 %v176
    %208 = vmatpush.msra.mxu0 %v175
    %209 = vmatpush.msra.mxu0 %v174
    %210 = vmatpush.msra.mxu0 %v173
    %211 = vmatpush.msra.mxu0 %v172
    %212 = vmatpush.msra.mxu0 %v171
    %213 = vmatpush.msra.mxu0 %v170
    %214 = vmatpush.msra.mxu0 %v169
    %215 = vmatpush.msra.mxu0 %v168
    %216 = vmatpush.msra.mxu0 %v167
    %217 = vmatpush.msra.mxu0 %v166
    %218 = vmatpush.msra.mxu0 %v165
    %219 = vmatpush.msra.mxu0 %v164
    %220 = vmatmul.f32.gmra.mxu0 %v147
    %v221 = vpop.f32.mrf.mxu0
    %v222 = vadd.f32 %v202, %v221
    %223 = vdwg.mxu0
    %224 = vst [vmem:[#allocation10] sm:$0xff] %v222
    // Predicated region
    $region38: #{mlp_forward.1} parent=1 // pred_check
      _
    $region39: #{mlp_forward.1} parent=1 // pred_check_branch
      %226 = sbr.rel (0) target = $region41
    $region40: #{mlp_forward.1} parent=1 // pred_region
      %228 = vsyncadd [#allocation4], 96
      %s229 = sshll.u32 [#allocation10], 4
      %s230 = int_to_ptr.vmem [resolvable:$true] %s229
      %s231 = sshll.u32 %s5, 4
      %s232 = int_to_ptr.hbm [resolvable:$true] %s231
      %237 = dma.vmem_to_hbm [thread:$0]  %s230, 32, %s232, [#allocation4], 32, 32, 2
    $region41: #{mlp_forward.1} parent=1 // pred_fallthru
      _
    // Predicated region
    $region42: #{mlp_forward.1} parent=1 // pred_check
      _
    $region43: #{mlp_forward.1} parent=1 // pred_check_branch
      %239 = sbr.rel (0) target = $region45
    $region44: #{mlp_forward.1} parent=1 // pred_region
      %241 = dma.done [#allocation4], 128
    $region45: #{mlp_forward.1} parent=1 // pred_fallthru
      _
    %242 = vsyncpa [#allocation3], 1
    %243 = vsyncpa [#allocation6], 1
    %244 = vsyncpa [#allocation9], 1
    %245 = vsyncpa [#allocation4], 1

</llo_original>
